<compile_context>
chip_gen: v6e
topology: v6e:2x2x1
jax: 0.10.0
libtpu: 0.0.40
codegen_flags: <defaults>
</compile_context>

<pallas_src>
import jax
import jax.numpy as jnp
from jax import lax
from jax.experimental import pallas as pl
from jax.experimental.pallas import tpu as pltpu


def _sms_kernel(p_ref, r_ref, o_ref):
    # p_ref: (Bt, N, C), r_ref: (Bt, M, C), o_ref: (Bt, N, M)
    p = p_ref[...]          # native dtype (bf16 stays bf16 -> fast MXU path)
    r = r_ref[...]

    # Affinity on the MXU, contracting over C (last dim) directly — no transpose.
    s = lax.dot_general(
        p, r,
        dimension_numbers=(((2,), (2,)), ((0,), (0,))),
        preferred_element_type=jnp.float32)                    # (Bt, N, M) f32

    # Row (axis=-1) softmax pieces — the only full-size exp in the kernel.
    m_r = jnp.max(s, axis=-1, keepdims=True)                    # (Bt, N, 1)
    e = jnp.exp(s - m_r)                                        # (Bt, N, M)
    row_sum = jnp.sum(e, axis=-1, keepdims=True)                # (Bt, N, 1)

    # Column (axis=-2) softmax reuses e:
    #   exp(S - G) = e * exp(m_r - G), G = global max  (overflow-safe; G cancels
    #   in the column normalisation, so this is exact).
    g = jnp.max(m_r, axis=-2, keepdims=True)                    # (Bt, 1, 1)
    w = e * jnp.exp(m_r - g)                                    # (Bt, N, M)

    # Column sum on the MXU (idle with tiny C) instead of a cross-sublane XLU reduce.
    ones = jnp.ones((w.shape[0], 1, w.shape[1]), dtype=w.dtype)  # (Bt, 1, N)
    col_sum = lax.dot_general(
        ones, w,
        dimension_numbers=(((2,), (1,)), ((0,), (0,))),
        preferred_element_type=jnp.float32)                     # (Bt, 1, M)

    inv_r = pl.reciprocal(row_sum, approx=True)                 # (Bt, N, 1)
    inv_c = pl.reciprocal(col_sum, approx=True)                 # (Bt, 1, M)

    # softmax_row * softmax_col, written straight to the output tile.
    o_ref[...] = ((e * inv_r) * (w * inv_c)).astype(o_ref.dtype)


def soft_mutual_score(pred_pair, reg_feat, out_dtype=jnp.float32):
    """pred_pair: [B, N, C], reg_feat: [B, M, C] -> [B, N, M] (out_dtype)."""
    B, N, C = pred_pair.shape
    Bm, M, Cm = reg_feat.shape
    assert B == Bm and C == Cm, "batch / feature dims must match"

    in_bytes = max(jnp.dtype(pred_pair.dtype).itemsize,
                   jnp.dtype(reg_feat.dtype).itemsize)
    out_bytes = jnp.dtype(out_dtype).itemsize

    # Double-buffered per-step block footprint (inputs + output), in bytes.
    def _step_bytes(bt):
        return 2 * bt * ((N + M) * C * in_bytes + N * M * out_bytes)

    # Keep blocks well inside scoped VMEM on every generation (v7x has 64 MiB total).
    budget = 16 * 1024 * 1024
    assert _step_bytes(1) <= budget, (
        "single-batch (N, M) block exceeds the VMEM budget; large N/M needs a "
        "two-pass tiled column softmax")
    # TODO(synk): add a two-pass (tiled-N) column softmax for very large N, M so
    #             the output block can be tiled and both v7x TensorCores fed.

    # Largest batch tile that divides B and fits the budget (amortizes the
    # ~0.35us per-grid-step overhead and gives the DMA pipeline work to overlap).
    bt = 1
    for cand in range(1, B + 1):
        if B % cand == 0 and _step_bytes(cand) <= budget:
            bt = cand

    return pl.pallas_call(
        _sms_kernel,
        out_shape=jax.ShapeDtypeStruct((B, N, M), out_dtype),
        grid_spec=pltpu.PrefetchScalarGridSpec(
            num_scalar_prefetch=0,
            grid=(B // bt,),
            in_specs=[
                pl.BlockSpec((bt, N, C), lambda b: (b, 0, 0)),
                pl.BlockSpec((bt, M, C), lambda b: (b, 0, 0)),
            ],
            out_specs=pl.BlockSpec((bt, N, M), lambda b: (b, 0, 0)),
        ),
        compiler_params=pltpu.CompilerParams(
            dimension_semantics=("parallel",),
            vmem_limit_bytes=32 * 1024 * 1024,
        ),
    )(pred_pair, reg_feat)


def soft_mutual_score_ref(pred_pair, reg_feat):
    s = jnp.einsum("bnc,bmc->bnm", pred_pair.astype(jnp.float32),
                   reg_feat.astype(jnp.float32))
    return jax.nn.softmax(s, axis=-1) * jax.nn.softmax(s, axis=-2)


if __name__ == "__main__":
    key = jax.random.PRNGKey(0)
    k1, k2 = jax.random.split(key)

    B, N, M, C = 2, 128, 128, 32
    pred_pair = jax.random.normal(k1, (B, N, C), dtype=jnp.float32)
    reg_feat = jax.random.normal(k2, (B, M, C), dtype=jnp.float32)

    out = soft_mutual_score(pred_pair, reg_feat)
    out = jax.block_until_ready(out)

    ref = soft_mutual_score_ref(pred_pair, reg_feat)
    assert out.shape == (B, N, M)
    # Tolerance re-baselined for the approx (EUP) reciprocals in the kernel.
    assert jnp.allclose(out, ref, atol=1e-3, rtol=1e-2), "mismatch vs reference"

    print("KERNEL_OK")
</pallas_src>

<mosaic_0001>
module attributes {stable_mosaic.version = 11 : i64} {
  func.func @_sms_kernel(%arg0: i32, %arg1: memref<2x128x32xf32, #tpu.memory_space<vmem>>, %arg2: memref<2x128x32xf32, #tpu.memory_space<vmem>>, %arg3: memref<2x128x128xf32, #tpu.memory_space<vmem>>) attributes {dimension_semantics = [#tpu.dimension_semantics<parallel>], iteration_bounds = array<i64: 1>, scalar_prefetch = 0 : i64, scratch_operands = 0 : i64, tpu.core_type = #tpu.core_type<tc>, window_params = [{transform_indices = @transform_0, window_bounds = array<i64: 2, 128, 32>}, {transform_indices = @transform_1, window_bounds = array<i64: 2, 128, 32>}, {transform_indices = @transform_2, window_bounds = array<i64: 2, 128, 128>}]} {
    %c0 = arith.constant 0 : index
    %c0_0 = arith.constant 0 : index
    %c0_1 = arith.constant 0 : index
    %0 = vector.load %arg1[%c0, %c0_0, %c0_1] : memref<2x128x32xf32, #tpu.memory_space<vmem>>, vector<2x128x32xf32>
    %c0_2 = arith.constant 0 : index
    %c0_3 = arith.constant 0 : index
    %c0_4 = arith.constant 0 : index
    %1 = vector.load %arg2[%c0_2, %c0_3, %c0_4] : memref<2x128x32xf32, #tpu.memory_space<vmem>>, vector<2x128x32xf32>
    %cst = arith.constant dense<0.000000e+00> : vector<2x128x128xf32>
    %2 = tpu.matmul %0, %1, %cst {dimension_numbers = #tpu.dot_dimension_numbers<[2], [2], [1], [1], [0, 0, 0, 1, 1, 1], [0], [0]>} : vector<2x128x32xf32>, vector<2x128x32xf32>, vector<2x128x128xf32> -> vector<2x128x128xf32>
    %cst_5 = arith.constant dense<0xFF800000> : vector<2x128xf32>
    %3 = vector.multi_reduction <maximumf>, %2, %cst_5 [2] : vector<2x128x128xf32> to vector<2x128xf32>
    %4 = vector.shape_cast %3 : vector<2x128xf32> to vector<2x128x1xf32>
    %5 = vector.broadcast %4 : vector<2x128x1xf32> to vector<2x128x128xf32>
    %6 = arith.subf %2, %5 : vector<2x128x128xf32>
    %7 = math.exp %6 : vector<2x128x128xf32>
    %cst_6 = arith.constant dense<0.000000e+00> : vector<2x128xf32>
    %8 = vector.multi_reduction <add>, %7, %cst_6 [2] : vector<2x128x128xf32> to vector<2x128xf32>
    %9 = vector.shape_cast %8 : vector<2x128xf32> to vector<2x128x1xf32>
    %cst_7 = arith.constant dense<0xFF800000> : vector<2x1xf32>
    %10 = vector.multi_reduction <maximumf>, %4, %cst_7 [1] : vector<2x128x1xf32> to vector<2x1xf32>
    %11 = vector.shape_cast %10 : vector<2x1xf32> to vector<2x1x1xf32>
    %12 = vector.broadcast %11 : vector<2x1x1xf32> to vector<2x128x1xf32>
    %13 = arith.subf %4, %12 : vector<2x128x1xf32>
    %14 = math.exp %13 : vector<2x128x1xf32>
    %15 = vector.broadcast %14 : vector<2x128x1xf32> to vector<2x128x128xf32>
    %16 = arith.mulf %7, %15 : vector<2x128x128xf32>
    %cst_8 = arith.constant 1.000000e+00 : f32
    %17 = vector.broadcast %cst_8 : f32 to vector<2x1x128xf32>
    %cst_9 = arith.constant dense<0.000000e+00> : vector<2x1x128xf32>
    %18 = tpu.matmul %17, %16, %cst_9 {dimension_numbers = #tpu.dot_dimension_numbers<[2], [1], [1], [2], [0, 0, 0, 1, 1, 2], [0], [0]>} : vector<2x1x128xf32>, vector<2x128x128xf32>, vector<2x1x128xf32> -> vector<2x1x128xf32>
    %19 = tpu.reciprocal %9 {approx = true} : vector<2x128x1xf32> -> vector<2x128x1xf32>
    %20 = tpu.reciprocal %18 {approx = true} : vector<2x1x128xf32> -> vector<2x1x128xf32>
    %21 = vector.broadcast %19 : vector<2x128x1xf32> to vector<2x128x128xf32>
    %22 = arith.mulf %7, %21 : vector<2x128x128xf32>
    %23 = vector.broadcast %20 : vector<2x1x128xf32> to vector<2x128x128xf32>
    %24 = arith.mulf %16, %23 : vector<2x128x128xf32>
    %25 = arith.mulf %22, %24 : vector<2x128x128xf32>
    %c0_10 = arith.constant 0 : index
    %c0_11 = arith.constant 0 : index
    %c0_12 = arith.constant 0 : index
    %26 = vector.load %arg3[%c0_10, %c0_11, %c0_12] : memref<2x128x128xf32, #tpu.memory_space<vmem>>, vector<2x128x128xf32>
    tpu.vector_store %arg3[%c0_10, %c0_11, %c0_12], %25 {strides = array<i32>} : memref<2x128x128xf32, #tpu.memory_space<vmem>>, vector<2x128x128xf32>,
    return
  }
  func.func @transform_0(%arg0: i32) -> (i32, i32, i32) {
    %c0_i32 = arith.constant 0 : i32
    %c0_i32_0 = arith.constant 0 : i32
    %c0_i32_1 = arith.constant 0 : i32
    return %arg0, %c0_i32, %c0_i32_0 : i32, i32, i32
  }
  func.func @transform_1(%arg0: i32) -> (i32, i32, i32) {
    %c0_i32 = arith.constant 0 : i32
    %c0_i32_0 = arith.constant 0 : i32
    %c0_i32_1 = arith.constant 0 : i32
    return %arg0, %c0_i32, %c0_i32_0 : i32, i32, i32
  }
  func.func @transform_2(%arg0: i32) -> (i32, i32, i32) {
    %c0_i32 = arith.constant 0 : i32
    %c0_i32_0 = arith.constant 0 : i32
    %c0_i32_1 = arith.constant 0 : i32
    return %arg0, %c0_i32, %c0_i32_0 : i32, i32, i32
  }
}

</mosaic_0001>

<llo_original>
// kernel: tpu_custom_call.1
$region0: #{tpu_custom_call.1}
  #allocation0 [shape = 'u32[]', space=smem, size = 0x4, offset = 0x4, fixed_abs, tag = 'smem constant byte address 0x4 - core index']
  #allocation1 [shape = 'u32[144,128]{1,0:T(1,128)}', space=vmem, size = 0x12000, scoped, tag = 'internal scratch']
  %s0 = inlined_call_operand.vmem [shape: f32[2,128,32], index: 0, kind: input, shape index: {}]
  %s1 = inlined_call_operand.vmem [shape: f32[2,128,32], index: 1, kind: input, shape index: {}]
  %s2 = inlined_call_operand.hbm [shape: f32[2,128,128], index: 2, kind: output, shape index: {}]
  %s3 = sld [smem:[#allocation0]]
  $region18: #{tpu_custom_call.1} parent=0
    _
  %s5 = ssub.s32 1, %s3
  %s6 = scalar_select 0, %s5, %s3
  $region1: #{tpu_custom_call.1} parent=0
    #allocation2 [shape = 'u8[131072]{0}', space=vmem, size = 0x20000, scoped, tag = 'output window, operand 0, single buffered']
    #allocation3 [shape = 's32[1]{0}', space=sflag, size = 0x4, scoped, tag = 'scoped memory for tpu_custom_call.1']
    %7 = vsyncpa [#allocation3], 0
    // Predicated region
    $region2: #{tpu_custom_call.1} parent=1 // pred_check
      _
    $region3: #{tpu_custom_call.1} parent=1 // pred_check_branch
      %9 = sbr.rel (0) target = $region5
    $region4: #{tpu_custom_call.1} parent=1 // pred_region
      _
    $region5: #{tpu_custom_call.1} parent=1 // pred_fallthru
      _
    // Predicated region
    $region6: #{tpu_custom_call.1} parent=1 // pred_check
      _
    $region7: #{tpu_custom_call.1} parent=1 // pred_check_branch
      %11 = sbr.rel (0) target = $region9
    $region8: #{tpu_custom_call.1} parent=1 // pred_region
      _
    $region9: #{tpu_custom_call.1} parent=1 // pred_fallthru
      _
    %v12 = vld [vmem:[%s0] sm:$0xff]
    %v13 = vld [vmem:[%s0 + $0x8] sm:$0xff]
    %v14 = vld [vmem:[%s0 + $0x10] sm:$0xff]
    %v15 = vld [vmem:[%s0 + $0x18] sm:$0xff]
    %v16 = vld [vmem:[%s0 + $0x20] sm:$0xff]
    %v17 = vld [vmem:[%s0 + $0x28] sm:$0xff]
    %v18 = vld [vmem:[%s0 + $0x30] sm:$0xff]
    %v19 = vld [vmem:[%s0 + $0x38] sm:$0xff]
    %v20 = vld [vmem:[%s0 + $0x40] sm:$0xff]
    %v21 = vld [vmem:[%s0 + $0x48] sm:$0xff]
    %v22 = vld [vmem:[%s0 + $0x50] sm:$0xff]
    %v23 = vld [vmem:[%s0 + $0x58] sm:$0xff]
    %v24 = vld [vmem:[%s0 + $0x60] sm:$0xff]
    %v25 = vld [vmem:[%s0 + $0x68] sm:$0xff]
    %v26 = vld [vmem:[%s0 + $0x70] sm:$0xff]
    %v27 = vld [vmem:[%s0 + $0x78] sm:$0xff]
    %v28 = vld [vmem:[%s0 + $0x80] sm:$0xff]
    %v29 = vld [vmem:[%s0 + $0x88] sm:$0xff]
    %v30 = vld [vmem:[%s0 + $0x90] sm:$0xff]
    %v31 = vld [vmem:[%s0 + $0x98] sm:$0xff]
    %v32 = vld [vmem:[%s0 + $0xa0] sm:$0xff]
    %v33 = vld [vmem:[%s0 + $0xa8] sm:$0xff]
    %v34 = vld [vmem:[%s0 + $0xb0] sm:$0xff]
    %v35 = vld [vmem:[%s0 + $0xb8] sm:$0xff]
    %v36 = vld [vmem:[%s0 + $0xc0] sm:$0xff]
    %v37 = vld [vmem:[%s0 + $0xc8] sm:$0xff]
    %v38 = vld [vmem:[%s0 + $0xd0] sm:$0xff]
    %v39 = vld [vmem:[%s0 + $0xd8] sm:$0xff]
    %v40 = vld [vmem:[%s0 + $0xe0] sm:$0xff]
    %v41 = vld [vmem:[%s0 + $0xe8] sm:$0xff]
    %v42 = vld [vmem:[%s0 + $0xf0] sm:$0xff]
    %v43 = vld [vmem:[%s0 + $0xf8] sm:$0xff]
    %v44 = vld [vmem:[%s1] sm:$0xff]
    %v45 = vld [vmem:[%s1 + $0x8] sm:$0xff]
    %v46 = vld [vmem:[%s1 + $0x10] sm:$0xff]
    %v47 = vld [vmem:[%s1 + $0x18] sm:$0xff]
    %v48 = vld [vmem:[%s1 + $0x20] sm:$0xff]
    %v49 = vld [vmem:[%s1 + $0x28] sm:$0xff]
    %v50 = vld [vmem:[%s1 + $0x30] sm:$0xff]
    %v51 = vld [vmem:[%s1 + $0x38] sm:$0xff]
    %v52 = vld [vmem:[%s1 + $0x40] sm:$0xff]
    %v53 = vld [vmem:[%s1 + $0x48] sm:$0xff]
    %v54 = vld [vmem:[%s1 + $0x50] sm:$0xff]
    %v55 = vld [vmem:[%s1 + $0x58] sm:$0xff]
    %v56 = vld [vmem:[%s1 + $0x60] sm:$0xff]
    %v57 = vld [vmem:[%s1 + $0x68] sm:$0xff]
    %v58 = vld [vmem:[%s1 + $0x70] sm:$0xff]
    %v59 = vld [vmem:[%s1 + $0x78] sm:$0xff]
    %v60 = vld [vmem:[%s1 + $0x80] sm:$0xff]
    %v61 = vld [vmem:[%s1 + $0x88] sm:$0xff]
    %v62 = vld [vmem:[%s1 + $0x90] sm:$0xff]
    %v63 = vld [vmem:[%s1 + $0x98] sm:$0xff]
    %v64 = vld [vmem:[%s1 + $0xa0] sm:$0xff]
    %v65 = vld [vmem:[%s1 + $0xa8] sm:$0xff]
    %v66 = vld [vmem:[%s1 + $0xb0] sm:$0xff]
    %v67 = vld [vmem:[%s1 + $0xb8] sm:$0xff]
    %v68 = vld [vmem:[%s1 + $0xc0] sm:$0xff]
    %v69 = vld [vmem:[%s1 + $0xc8] sm:$0xff]
    %v70 = vld [vmem:[%s1 + $0xd0] sm:$0xff]
    %v71 = vld [vmem:[%s1 + $0xd8] sm:$0xff]
    %v72 = vld [vmem:[%s1 + $0xe0] sm:$0xff]
    %v73 = vld [vmem:[%s1 + $0xe8] sm:$0xff]
    %v74 = vld [vmem:[%s1 + $0xf0] sm:$0xff]
    %v75 = vld [vmem:[%s1 + $0xf8] sm:$0xff]
    %vm76 = vcmask 261120
    %v78 = vsel %vm76, %v12, 0
    %v81 = vsel %vm76, %v13, 0
    %v84 = vsel %vm76, %v14, 0
    %v87 = vsel %vm76, %v15, 0
    %v90 = vsel %vm76, %v16, 0
    %v93 = vsel %vm76, %v17, 0
    %v96 = vsel %vm76, %v18, 0
    %v99 = vsel %vm76, %v19, 0
    %v102 = vsel %vm76, %v20, 0
    %v105 = vsel %vm76, %v21, 0
    %v108 = vsel %vm76, %v22, 0
    %v111 = vsel %vm76, %v23, 0
    %v114 = vsel %vm76, %v24, 0
    %v117 = vsel %vm76, %v25, 0
    %v120 = vsel %vm76, %v26, 0
    %v123 = vsel %vm76, %v27, 0
    %v126 = vsel %vm76, %v44, 0
    %v129 = vsel %vm76, %v45, 0
    %v132 = vsel %vm76, %v46, 0
    %v135 = vsel %vm76, %v47, 0
    %v138 = vsel %vm76, %v48, 0
    %v141 = vsel %vm76, %v49, 0
    %v144 = vsel %vm76, %v50, 0
    %v147 = vsel %vm76, %v51, 0
    %v150 = vsel %vm76, %v52, 0
    %v153 = vsel %vm76, %v53, 0
    %v156 = vsel %vm76, %v54, 0
    %v159 = vsel %vm76, %v55, 0
    %v162 = vsel %vm76, %v56, 0
    %v165 = vsel %vm76, %v57, 0
    %v168 = vsel %vm76, %v58, 0
    %v171 = vsel %vm76, %v59, 0
    %173 = vmatprep.subr.mxu0 0.0
    %174 = vmatpush1.xpose.msra.mxu0 %v171
    %175 = vmatprep.subr.mxu0 0.0
    %176 = vmatpush1.xpose.msra.mxu0 %v168
    %177 = vmatprep.subr.mxu0 0.0
    %178 = vmatpush1.xpose.msra.mxu0 %v165
    %179 = vmatprep.subr.mxu0 0.0
    %180 = vmatpush1.xpose.msra.mxu0 %v162
    %181 = vmatprep.subr.mxu0 0.0
    %182 = vmatpush1.xpose.msra.mxu0 %v159
    %183 = vmatprep.subr.mxu0 0.0
    %184 = vmatpush1.xpose.msra.mxu0 %v156
    %185 = vmatprep.subr.mxu0 0.0
    %186 = vmatpush1.xpose.msra.mxu0 %v153
    %187 = vmatprep.subr.mxu0 0.0
    %188 = vmatpush1.xpose.msra.mxu0 %v150
    %189 = vmatprep.subr.mxu0 0.0
    %190 = vmatpush1.xpose.msra.mxu0 %v147
    %191 = vmatprep.subr.mxu0 0.0
    %192 = vmatpush1.xpose.msra.mxu0 %v144
    %193 = vmatprep.subr.mxu0 0.0
    %194 = vmatpush1.xpose.msra.mxu0 %v141
    %195 = vmatprep.subr.mxu0 0.0
    %196 = vmatpush1.xpose.msra.mxu0 %v138
    %197 = vmatprep.subr.mxu0 0.0
    %198 = vmatpush1.xpose.msra.mxu0 %v135
    %199 = vmatprep.subr.mxu0 0.0
    %200 = vmatpush1.xpose.msra.mxu0 %v132
    %201 = vmatprep.subr.mxu0 0.0
    %202 = vmatpush1.xpose.msra.mxu0 %v129
    %203 = vmatprep.subr.mxu0 0.0
    %204 = vmatpush1.xpose.msra.mxu0 %v126
    %205 = vmatprep.subr.mxu0 0.0
    %206 = vmatpush2.xpose.msra.mxu0 0.0
    %207 = vmatprep.subr.mxu0 0.0
    %208 = vmatpush2.xpose.msra.mxu0 0.0
    %209 = vmatprep.subr.mxu0 0.0
    %210 = vmatpush2.xpose.msra.mxu0 0.0
    %211 = vmatprep.subr.mxu0 0.0
    %212 = vmatpush2.xpose.msra.mxu0 0.0
    %213 = vmatprep.subr.mxu0 0.0
    %214 = vmatpush2.xpose.msra.mxu0 0.0
    %215 = vmatprep.subr.mxu0 0.0
    %216 = vmatpush2.xpose.msra.mxu0 0.0
    %217 = vmatprep.subr.mxu0 0.0
    %218 = vmatpush2.xpose.msra.mxu0 0.0
    %219 = vmatprep.subr.mxu0 0.0
    %220 = vmatpush2.xpose.msra.mxu0 0.0
    %221 = vmatprep.subr.mxu0 0.0
    %222 = vmatpush2.xpose.msra.mxu0 0.0
    %223 = vmatprep.subr.mxu0 0.0
    %224 = vmatpush2.xpose.msra.mxu0 0.0
    %225 = vmatprep.subr.mxu0 0.0
    %226 = vmatpush2.xpose.msra.mxu0 0.0
    %227 = vmatprep.subr.mxu0 0.0
    %228 = vmatpush2.xpose.msra.mxu0 0.0
    %229 = vmatprep.subr.mxu0 0.0
    %230 = vmatpush2.xpose.msra.mxu0 0.0
    %231 = vmatprep.subr.mxu0 0.0
    %232 = vmatpush2.xpose.msra.mxu0 0.0
    %233 = vmatprep.subr.mxu0 0.0
    %234 = vmatpush2.xpose.msra.mxu0 0.0
    %235 = vmatprep.subr.mxu0 0.0
    %236 = vmatpush2.xpose.msra.mxu0 0.0
    %237 = vmatprep.mubr.f32.mxu0 0.0
    %238 = vmatmul.mubr.f32.gmra.mxu0 %v78
    %v239 = vpop.f32.mrf.mxu0
    %v240 = vadd.f32 0.0, %v239
    %v241 = vpop.f32.mrf.mxu0
    %242 = vmatprep.mubr.f32.mxu0 0.0
    %243 = vmatmul.mubr.f32.gmra.mxu0 %v81
    %v244 = vpop.f32.mrf.mxu0
    %v245 = vadd.f32 0.0, %v244
    %v246 = vpop.f32.mrf.mxu0
    %247 = vmatprep.mubr.f32.mxu0 0.0
    %248 = vmatmul.mubr.f32.gmra.mxu0 %v84
    %v249 = vpop.f32.mrf.mxu0
    %v250 = vadd.f32 0.0, %v249
    %v251 = vpop.f32.mrf.mxu0
    %252 = vmatprep.mubr.f32.mxu0 0.0
    %253 = vmatmul.mubr.f32.gmra.mxu0 %v87
    %v254 = vpop.f32.mrf.mxu0
    %v255 = vadd.f32 0.0, %v254
    %v256 = vpop.f32.mrf.mxu0
    %257 = vmatprep.mubr.f32.mxu0 0.0
    %258 = vmatmul.mubr.f32.gmra.mxu0 %v90
    %v259 = vpop.f32.mrf.mxu0
    %v260 = vadd.f32 0.0, %v259
    %v261 = vpop.f32.mrf.mxu0
    %262 = vmatprep.mubr.f32.mxu0 0.0
    %263 = vmatmul.mubr.f32.gmra.mxu0 %v93
    %v264 = vpop.f32.mrf.mxu0
    %v265 = vadd.f32 0.0, %v264
    %v266 = vpop.f32.mrf.mxu0
    %267 = vmatprep.mubr.f32.mxu0 0.0
    %268 = vmatmul.mubr.f32.gmra.mxu0 %v96
    %v269 = vpop.f32.mrf.mxu0
    %v270 = vadd.f32 0.0, %v269
    %v271 = vpop.f32.mrf.mxu0
    %272 = vmatprep.mubr.f32.mxu0 0.0
    %273 = vmatmul.mubr.f32.gmra.mxu0 %v99
    %v274 = vpop.f32.mrf.mxu0
    %v275 = vadd.f32 0.0, %v274
    %v276 = vpop.f32.mrf.mxu0
    %277 = vmatprep.mubr.f32.mxu0 0.0
    %278 = vmatmul.mubr.f32.gmra.mxu0 %v102
    %v279 = vpop.f32.mrf.mxu0
    %v280 = vadd.f32 0.0, %v279
    %v281 = vpop.f32.mrf.mxu0
    %282 = vmatprep.mubr.f32.mxu0 0.0
    %283 = vmatmul.mubr.f32.gmra.mxu0 %v105
    %v284 = vpop.f32.mrf.mxu0
    %v285 = vadd.f32 0.0, %v284
    %v286 = vpop.f32.mrf.mxu0
    %287 = vmatprep.mubr.f32.mxu0 0.0
    %288 = vmatmul.mubr.f32.gmra.mxu0 %v108
    %v289 = vpop.f32.mrf.mxu0
    %v290 = vadd.f32 0.0, %v289
    %v291 = vpop.f32.mrf.mxu0
    %292 = vmatprep.mubr.f32.mxu0 0.0
    %293 = vmatmul.mubr.f32.gmra.mxu0 %v111
    %v294 = vpop.f32.mrf.mxu0
    %v295 = vadd.f32 0.0, %v294
    %v296 = vpop.f32.mrf.mxu0
    %297 = vmatprep.mubr.f32.mxu0 0.0
    %298 = vmatmul.mubr.f32.gmra.mxu0 %v114
    %v299 = vpop.f32.mrf.mxu0
    %v300 = vadd.f32 0.0, %v299
    %v301 = vpop.f32.mrf.mxu0
    %302 = vmatprep.mubr.f32.mxu0 0.0
    %303 = vmatmul.mubr.f32.gmra.mxu0 %v117
    %v304 = vpop.f32.mrf.mxu0
    %v305 = vadd.f32 0.0, %v304
    %v306 = vpop.f32.mrf.mxu0
    %307 = vmatprep.mubr.f32.mxu0 0.0
    %308 = vmatmul.mubr.f32.gmra.mxu0 %v120
    %v309 = vpop.f32.mrf.mxu0
    %v310 = vadd.f32 0.0, %v309
    %v311 = vpop.f32.mrf.mxu0
    %312 = vmatprep.mubr.f32.mxu0 0.0
    %313 = vmatmul.mubr.f32.gmra.mxu0 %v123
    %v314 = vpop.f32.mrf.mxu0
    %v315 = vadd.f32 0.0, %v314
    %v316 = vpop.f32.mrf.mxu0
    %317 = vdwg.mxu0
    %v319 = vsel %vm76, %v28, 0
    %v322 = vsel %vm76, %v29, 0
    %v325 = vsel %vm76, %v30, 0
    %v328 = vsel %vm76, %v31, 0
    %v331 = vsel %vm76, %v32, 0
    %v334 = vsel %vm76, %v33, 0
    %v337 = vsel %vm76, %v34, 0
    %v340 = vsel %vm76, %v35, 0
    %v343 = vsel %vm76, %v36, 0
    %v346 = vsel %vm76, %v37, 0
    %v349 = vsel %vm76, %v38, 0
    %v352 = vsel %vm76, %v39, 0
    %v355 = vsel %vm76, %v40, 0
    %v358 = vsel %vm76, %v41, 0
    %v361 = vsel %vm76, %v42, 0
    %v364 = vsel %vm76, %v43, 0
    %v367 = vsel %vm76, %v60, 0
    %v370 = vsel %vm76, %v61, 0
    %v373 = vsel %vm76, %v62, 0
    %v376 = vsel %vm76, %v63, 0
    %v379 = vsel %vm76, %v64, 0
    %v382 = vsel %vm76, %v65, 0
    %v385 = vsel %vm76, %v66, 0
    %v388 = vsel %vm76, %v67, 0
    %v391 = vsel %vm76, %v68, 0
    %v394 = vsel %vm76, %v69, 0
    %v397 = vsel %vm76, %v70, 0
    %v400 = vsel %vm76, %v71, 0
    %v403 = vsel %vm76, %v72, 0
    %v406 = vsel %vm76, %v73, 0
    %v409 = vsel %vm76, %v74, 0
    %v412 = vsel %vm76, %v75, 0
    %414 = vmatprep.subr.mxu0 0.0
    %415 = vmatpush1.xpose.msra.mxu0 %v412
    %416 = vmatprep.subr.mxu0 0.0
    %417 = vmatpush1.xpose.msra.mxu0 %v409
    %418 = vmatprep.subr.mxu0 0.0
    %419 = vmatpush1.xpose.msra.mxu0 %v406
    %420 = vmatprep.subr.mxu0 0.0
    %421 = vmatpush1.xpose.msra.mxu0 %v403
    %422 = vmatprep.subr.mxu0 0.0
    %423 = vmatpush1.xpose.msra.mxu0 %v400
    %424 = vmatprep.subr.mxu0 0.0
    %425 = vmatpush1.xpose.msra.mxu0 %v397
    %426 = vmatprep.subr.mxu0 0.0
    %427 = vmatpush1.xpose.msra.mxu0 %v394
    %428 = vmatprep.subr.mxu0 0.0
    %429 = vmatpush1.xpose.msra.mxu0 %v391
    %430 = vmatprep.subr.mxu0 0.0
    %431 = vmatpush1.xpose.msra.mxu0 %v388
    %432 = vmatprep.subr.mxu0 0.0
    %433 = vmatpush1.xpose.msra.mxu0 %v385
    %434 = vmatprep.subr.mxu0 0.0
    %435 = vmatpush1.xpose.msra.mxu0 %v382
    %436 = vmatprep.subr.mxu0 0.0
    %437 = vmatpush1.xpose.msra.mxu0 %v379
    %438 = vmatprep.subr.mxu0 0.0
    %439 = vmatpush1.xpose.msra.mxu0 %v376
    %440 = vmatprep.subr.mxu0 0.0
    %441 = vmatpush1.xpose.msra.mxu0 %v373
    %442 = vmatprep.subr.mxu0 0.0
    %443 = vmatpush1.xpose.msra.mxu0 %v370
    %444 = vmatprep.subr.mxu0 0.0
    %445 = vmatpush1.xpose.msra.mxu0 %v367
    %446 = vmatprep.subr.mxu0 0.0
    %447 = vmatpush2.xpose.msra.mxu0 0.0
    %448 = vmatprep.subr.mxu0 0.0
    %449 = vmatpush2.xpose.msra.mxu0 0.0
    %450 = vmatprep.subr.mxu0 0.0
    %451 = vmatpush2.xpose.msra.mxu0 0.0
    %452 = vmatprep.subr.mxu0 0.0
    %453 = vmatpush2.xpose.msra.mxu0 0.0
    %454 = vmatprep.subr.mxu0 0.0
    %455 = vmatpush2.xpose.msra.mxu0 0.0
    %456 = vmatprep.subr.mxu0 0.0
    %457 = vmatpush2.xpose.msra.mxu0 0.0
    %458 = vmatprep.subr.mxu0 0.0
    %459 = vmatpush2.xpose.msra.mxu0 0.0
    %460 = vmatprep.subr.mxu0 0.0
    %461 = vmatpush2.xpose.msra.mxu0 0.0
    %462 = vmatprep.subr.mxu0 0.0
    %463 = vmatpush2.xpose.msra.mxu0 0.0
    %464 = vmatprep.subr.mxu0 0.0
    %465 = vmatpush2.xpose.msra.mxu0 0.0
    %466 = vmatprep.subr.mxu0 0.0
    %467 = vmatpush2.xpose.msra.mxu0 0.0
    %468 = vmatprep.subr.mxu0 0.0
    %469 = vmatpush2.xpose.msra.mxu0 0.0
    %470 = vmatprep.subr.mxu0 0.0
    %471 = vmatpush2.xpose.msra.mxu0 0.0
    %472 = vmatprep.subr.mxu0 0.0
    %473 = vmatpush2.xpose.msra.mxu0 0.0
    %474 = vmatprep.subr.mxu0 0.0
    %475 = vmatpush2.xpose.msra.mxu0 0.0
    %476 = vmatprep.subr.mxu0 0.0
    %477 = vmatpush2.xpose.msra.mxu0 0.0
    %478 = vmatprep.mubr.f32.mxu0 0.0
    %479 = vmatmul.mubr.f32.gmra.mxu0 %v319
    %v480 = vpop.f32.mrf.mxu0
    %v481 = vadd.f32 0.0, %v480
    %v482 = vpop.f32.mrf.mxu0
    %483 = vmatprep.mubr.f32.mxu0 0.0
    %484 = vmatmul.mubr.f32.gmra.mxu0 %v322
    %v485 = vpop.f32.mrf.mxu0
    %v486 = vadd.f32 0.0, %v485
    %v487 = vpop.f32.mrf.mxu0
    %488 = vmatprep.mubr.f32.mxu0 0.0
    %489 = vmatmul.mubr.f32.gmra.mxu0 %v325
    %v490 = vpop.f32.mrf.mxu0
    %v491 = vadd.f32 0.0, %v490
    %v492 = vpop.f32.mrf.mxu0
    %493 = vmatprep.mubr.f32.mxu0 0.0
    %494 = vmatmul.mubr.f32.gmra.mxu0 %v328
    %v495 = vpop.f32.mrf.mxu0
    %v496 = vadd.f32 0.0, %v495
    %v497 = vpop.f32.mrf.mxu0
    %498 = vmatprep.mubr.f32.mxu0 0.0
    %499 = vmatmul.mubr.f32.gmra.mxu0 %v331
    %v500 = vpop.f32.mrf.mxu0
    %v501 = vadd.f32 0.0, %v500
    %v502 = vpop.f32.mrf.mxu0
    %503 = vmatprep.mubr.f32.mxu0 0.0
    %504 = vmatmul.mubr.f32.gmra.mxu0 %v334
    %v505 = vpop.f32.mrf.mxu0
    %v506 = vadd.f32 0.0, %v505
    %v507 = vpop.f32.mrf.mxu0
    %508 = vmatprep.mubr.f32.mxu0 0.0
    %509 = vmatmul.mubr.f32.gmra.mxu0 %v337
    %v510 = vpop.f32.mrf.mxu0
    %v511 = vadd.f32 0.0, %v510
    %v512 = vpop.f32.mrf.mxu0
    %513 = vmatprep.mubr.f32.mxu0 0.0
    %514 = vmatmul.mubr.f32.gmra.mxu0 %v340
    %v515 = vpop.f32.mrf.mxu0
    %v516 = vadd.f32 0.0, %v515
    %v517 = vpop.f32.mrf.mxu0
    %518 = vmatprep.mubr.f32.mxu0 0.0
    %519 = vmatmul.mubr.f32.gmra.mxu0 %v343
    %v520 = vpop.f32.mrf.mxu0
    %v521 = vadd.f32 0.0, %v520
    %v522 = vpop.f32.mrf.mxu0
    %523 = vmatprep.mubr.f32.mxu0 0.0
    %524 = vmatmul.mubr.f32.gmra.mxu0 %v346
    %v525 = vpop.f32.mrf.mxu0
    %v526 = vadd.f32 0.0, %v525
    %v527 = vpop.f32.mrf.mxu0
    %528 = vmatprep.mubr.f32.mxu0 0.0
    %529 = vmatmul.mubr.f32.gmra.mxu0 %v349
    %v530 = vpop.f32.mrf.mxu0
    %v531 = vadd.f32 0.0, %v530
    %v532 = vpop.f32.mrf.mxu0
    %533 = vmatprep.mubr.f32.mxu0 0.0
    %534 = vmatmul.mubr.f32.gmra.mxu0 %v352
    %v535 = vpop.f32.mrf.mxu0
    %v536 = vadd.f32 0.0, %v535
    %v537 = vpop.f32.mrf.mxu0
    %538 = vmatprep.mubr.f32.mxu0 0.0
    %539 = vmatmul.mubr.f32.gmra.mxu0 %v355
    %v540 = vpop.f32.mrf.mxu0
    %v541 = vadd.f32 0.0, %v540
    %v542 = vpop.f32.mrf.mxu0
    %543 = vmatprep.mubr.f32.mxu0 0.0
    %544 = vmatmul.mubr.f32.gmra.mxu0 %v358
    %v545 = vpop.f32.mrf.mxu0
    %v546 = vadd.f32 0.0, %v545
    %v547 = vpop.f32.mrf.mxu0
    %548 = vmatprep.mubr.f32.mxu0 0.0
    %549 = vmatmul.mubr.f32.gmra.mxu0 %v361
    %v550 = vpop.f32.mrf.mxu0
    %v551 = vadd.f32 0.0, %v550
    %v552 = vpop.f32.mrf.mxu0
    %553 = vmatprep.mubr.f32.mxu0 0.0
    %554 = vmatmul.mubr.f32.gmra.mxu0 %v364
    %v555 = vpop.f32.mrf.mxu0
    %v556 = vadd.f32 0.0, %v555
    %v557 = vpop.f32.mrf.mxu0
    %558 = vdwg.mxu0
    %559 = vmax.xlane.f32.xlu0 %v240
    %v560 = vpop.xlane.xlu0 %559
    %561 = vmax.xlane.f32.xlu0 %v245
    %v562 = vpop.xlane.xlu0 %561
    %563 = vmax.xlane.f32.xlu0 %v250
    %v564 = vpop.xlane.xlu0 %563
    %565 = vmax.xlane.f32.xlu0 %v255
    %v566 = vpop.xlane.xlu0 %565
    %567 = vmax.xlane.f32.xlu0 %v260
    %v568 = vpop.xlane.xlu0 %567
    %569 = vmax.xlane.f32.xlu0 %v265
    %v570 = vpop.xlane.xlu0 %569
    %571 = vmax.xlane.f32.xlu0 %v270
    %v572 = vpop.xlane.xlu0 %571
    %573 = vmax.xlane.f32.xlu0 %v275
    %v574 = vpop.xlane.xlu0 %573
    %575 = vmax.xlane.f32.xlu0 %v280
    %v576 = vpop.xlane.xlu0 %575
    %577 = vmax.xlane.f32.xlu0 %v285
    %v578 = vpop.xlane.xlu0 %577
    %579 = vmax.xlane.f32.xlu0 %v290
    %v580 = vpop.xlane.xlu0 %579
    %581 = vmax.xlane.f32.xlu0 %v295
    %v582 = vpop.xlane.xlu0 %581
    %583 = vmax.xlane.f32.xlu0 %v300
    %v584 = vpop.xlane.xlu0 %583
    %585 = vmax.xlane.f32.xlu0 %v305
    %v586 = vpop.xlane.xlu0 %585
    %587 = vmax.xlane.f32.xlu0 %v310
    %v588 = vpop.xlane.xlu0 %587
    %589 = vmax.xlane.f32.xlu0 %v315
    %v590 = vpop.xlane.xlu0 %589
    %591 = vmax.xlane.f32.xlu0 %v481
    %v592 = vpop.xlane.xlu0 %591
    %593 = vmax.xlane.f32.xlu0 %v486
    %v594 = vpop.xlane.xlu0 %593
    %595 = vmax.xlane.f32.xlu0 %v491
    %v596 = vpop.xlane.xlu0 %595
    %597 = vmax.xlane.f32.xlu0 %v496
    %v598 = vpop.xlane.xlu0 %597
    %599 = vmax.xlane.f32.xlu0 %v501
    %v600 = vpop.xlane.xlu0 %599
    %601 = vmax.xlane.f32.xlu0 %v506
    %v602 = vpop.xlane.xlu0 %601
    %603 = vmax.xlane.f32.xlu0 %v511
    %v604 = vpop.xlane.xlu0 %603
    %605 = vmax.xlane.f32.xlu0 %v516
    %v606 = vpop.xlane.xlu0 %605
    %607 = vmax.xlane.f32.xlu0 %v521
    %v608 = vpop.xlane.xlu0 %607
    %609 = vmax.xlane.f32.xlu0 %v526
    %v610 = vpop.xlane.xlu0 %609
    %611 = vmax.xlane.f32.xlu0 %v531
    %v612 = vpop.xlane.xlu0 %611
    %613 = vmax.xlane.f32.xlu0 %v536
    %v614 = vpop.xlane.xlu0 %613
    %615 = vmax.xlane.f32.xlu0 %v541
    %v616 = vpop.xlane.xlu0 %615
    %617 = vmax.xlane.f32.xlu0 %v546
    %v618 = vpop.xlane.xlu0 %617
    %619 = vmax.xlane.f32.xlu0 %v551
    %v620 = vpop.xlane.xlu0 %619
    %621 = vmax.xlane.f32.xlu0 %v556
    %v622 = vpop.xlane.xlu0 %621
    %v623 = vsub.f32 %v240, %v560
    %v624 = vsub.f32 %v245, %v562
    %v625 = vsub.f32 %v250, %v564
    %v626 = vsub.f32 %v255, %v566
    %v627 = vsub.f32 %v260, %v568
    %v628 = vsub.f32 %v265, %v570
    %v629 = vsub.f32 %v270, %v572
    %v630 = vsub.f32 %v275, %v574
    %v631 = vsub.f32 %v280, %v576
    %v632 = vsub.f32 %v285, %v578
    %v633 = vsub.f32 %v290, %v580
    %v634 = vsub.f32 %v295, %v582
    %v635 = vsub.f32 %v300, %v584
    %v636 = vsub.f32 %v305, %v586
    %v637 = vsub.f32 %v310, %v588
    %v638 = vsub.f32 %v315, %v590
    %v639 = vsub.f32 %v481, %v592
    %v640 = vsub.f32 %v486, %v594
    %v641 = vsub.f32 %v491, %v596
    %v642 = vsub.f32 %v496, %v598
    %v643 = vsub.f32 %v501, %v600
    %v644 = vsub.f32 %v506, %v602
    %v645 = vsub.f32 %v511, %v604
    %v646 = vsub.f32 %v516, %v606
    %v647 = vsub.f32 %v521, %v608
    %v648 = vsub.f32 %v526, %v610
    %v649 = vsub.f32 %v531, %v612
    %v650 = vsub.f32 %v536, %v614
    %v651 = vsub.f32 %v541, %v616
    %v652 = vsub.f32 %v546, %v618
    %v653 = vsub.f32 %v551, %v620
    %v654 = vsub.f32 %v556, %v622
    %v655 = vmul.f32 %v623, 1.442695
    %v656 = vpow.pop %v655
    %v657 = vmul.f32 %v624, 1.442695
    %v658 = vpow.pop %v657
    %v659 = vmul.f32 %v625, 1.442695
    %v660 = vpow.pop %v659
    %v661 = vmul.f32 %v626, 1.442695
    %v662 = vpow.pop %v661
    %v663 = vmul.f32 %v627, 1.442695
    %v664 = vpow.pop %v663
    %v665 = vmul.f32 %v628, 1.442695
    %v666 = vpow.pop %v665
    %v667 = vmul.f32 %v629, 1.442695
    %v668 = vpow.pop %v667
    %v669 = vmul.f32 %v630, 1.442695
    %v670 = vpow.pop %v669
    %v671 = vmul.f32 %v631, 1.442695
    %v672 = vpow.pop %v671
    %v673 = vmul.f32 %v632, 1.442695
    %v674 = vpow.pop %v673
    %v675 = vmul.f32 %v633, 1.442695
    %v676 = vpow.pop %v675
    %v677 = vmul.f32 %v634, 1.442695
    %v678 = vpow.pop %v677
    %v679 = vmul.f32 %v635, 1.442695
    %v680 = vpow.pop %v679
    %v681 = vmul.f32 %v636, 1.442695
    %v682 = vpow.pop %v681
    %v683 = vmul.f32 %v637, 1.442695
    %v684 = vpow.pop %v683
    %v685 = vmul.f32 %v638, 1.442695
    %v686 = vpow.pop %v685
    %v687 = vmul.f32 %v639, 1.442695
    %v688 = vpow.pop %v687
    %v689 = vmul.f32 %v640, 1.442695
    %v690 = vpow.pop %v689
    %v691 = vmul.f32 %v641, 1.442695
    %v692 = vpow.pop %v691
    %v693 = vmul.f32 %v642, 1.442695
    %v694 = vpow.pop %v693
    %v695 = vmul.f32 %v643, 1.442695
    %v696 = vpow.pop %v695
    %v697 = vmul.f32 %v644, 1.442695
    %v698 = vpow.pop %v697
    %v699 = vmul.f32 %v645, 1.442695
    %v700 = vpow.pop %v699
    %v701 = vmul.f32 %v646, 1.442695
    %v702 = vpow.pop %v701
    %v703 = vmul.f32 %v647, 1.442695
    %v704 = vpow.pop %v703
    %v705 = vmul.f32 %v648, 1.442695
    %v706 = vpow.pop %v705
    %v707 = vmul.f32 %v649, 1.442695
    %v708 = vpow.pop %v707
    %v709 = vmul.f32 %v650, 1.442695
    %v710 = vpow.pop %v709
    %v711 = vmul.f32 %v651, 1.442695
    %v712 = vpow.pop %v711
    %v713 = vmul.f32 %v652, 1.442695
    %v714 = vpow.pop %v713
    %v715 = vmul.f32 %v653, 1.442695
    %v716 = vpow.pop %v715
    %v717 = vmul.f32 %v654, 1.442695
    %v718 = vpow.pop %v717
    %719 = vadd.xlane.f32.xlu0 %v656
    %v720 = vpop.xlane.xlu0 %719
    %721 = vadd.xlane.f32.xlu0 %v658
    %v722 = vpop.xlane.xlu0 %721
    %723 = vadd.xlane.f32.xlu0 %v660
    %v724 = vpop.xlane.xlu0 %723
    %725 = vadd.xlane.f32.xlu0 %v662
    %v726 = vpop.xlane.xlu0 %725
    %727 = vadd.xlane.f32.xlu0 %v664
    %v728 = vpop.xlane.xlu0 %727
    %729 = vadd.xlane.f32.xlu0 %v666
    %v730 = vpop.xlane.xlu0 %729
    %731 = vadd.xlane.f32.xlu0 %v668
    %v732 = vpop.xlane.xlu0 %731
    %733 = vadd.xlane.f32.xlu0 %v670
    %v734 = vpop.xlane.xlu0 %733
    %735 = vadd.xlane.f32.xlu0 %v672
    %v736 = vpop.xlane.xlu0 %735
    %737 = vadd.xlane.f32.xlu0 %v674
    %v738 = vpop.xlane.xlu0 %737
    %739 = vadd.xlane.f32.xlu0 %v676
    %v740 = vpop.xlane.xlu0 %739
    %741 = vadd.xlane.f32.xlu0 %v678
    %v742 = vpop.xlane.xlu0 %741
    %743 = vadd.xlane.f32.xlu0 %v680
    %v744 = vpop.xlane.xlu0 %743
    %745 = vadd.xlane.f32.xlu0 %v682
    %v746 = vpop.xlane.xlu0 %745
    %747 = vadd.xlane.f32.xlu0 %v684
    %v748 = vpop.xlane.xlu0 %747
    %749 = vadd.xlane.f32.xlu0 %v686
    %v750 = vpop.xlane.xlu0 %749
    %751 = vadd.xlane.f32.xlu0 %v688
    %v752 = vpop.xlane.xlu0 %751
    %753 = vadd.xlane.f32.xlu0 %v690
    %v754 = vpop.xlane.xlu0 %753
    %755 = vadd.xlane.f32.xlu0 %v692
    %v756 = vpop.xlane.xlu0 %755
    %757 = vadd.xlane.f32.xlu0 %v694
    %v758 = vpop.xlane.xlu0 %757
    %759 = vadd.xlane.f32.xlu0 %v696
    %v760 = vpop.xlane.xlu0 %759
    %761 = vadd.xlane.f32.xlu0 %v698
    %v762 = vpop.xlane.xlu0 %761
    %763 = vadd.xlane.f32.xlu0 %v700
    %v764 = vpop.xlane.xlu0 %763
    %765 = vadd.xlane.f32.xlu0 %v702
    %v766 = vpop.xlane.xlu0 %765
    %767 = vadd.xlane.f32.xlu0 %v704
    %v768 = vpop.xlane.xlu0 %767
    %769 = vadd.xlane.f32.xlu0 %v706
    %v770 = vpop.xlane.xlu0 %769
    %771 = vadd.xlane.f32.xlu0 %v708
    %v772 = vpop.xlane.xlu0 %771
    %773 = vadd.xlane.f32.xlu0 %v710
    %v774 = vpop.xlane.xlu0 %773
    %775 = vadd.xlane.f32.xlu0 %v712
    %v776 = vpop.xlane.xlu0 %775
    %777 = vadd.xlane.f32.xlu0 %v714
    %v778 = vpop.xlane.xlu0 %777
    %779 = vadd.xlane.f32.xlu0 %v716
    %v780 = vpop.xlane.xlu0 %779
    %781 = vadd.xlane.f32.xlu0 %v718
    %v782 = vpop.xlane.xlu0 %781
    %v783 = vmax.f32 %v560, %v564
    %v784 = vmax.f32 %v562, %v566
    %v785 = vmax.f32 %v783, %v568
    %v786 = vmax.f32 %v784, %v570
    %v787 = vmax.f32 %v785, %v572
    %v788 = vmax.f32 %v786, %v574
    %v789 = vmax.f32 %v787, %v576
    %v790 = vmax.f32 %v788, %v578
    %v791 = vmax.f32 %v789, %v580
    %v792 = vmax.f32 %v790, %v582
    %v793 = vmax.f32 %v791, %v584
    %v794 = vmax.f32 %v792, %v586
    %v795 = vmax.f32 %v793, %v588
    %v796 = vmax.f32 %v794, %v590
    %v797 = vmax.f32 %v795, %v796
    %v798 = vrot.slane %v797, 4
    %v799 = vmax.f32 %v797, %v798
    %v800 = vrot.slane %v799, 2
    %v801 = vmax.f32 %v799, %v800
    %v802 = vrot.slane %v801, 1
    %v803 = vmax.f32 %v801, %v802
    %v804 = vmax.f32 %v592, %v596
    %v805 = vmax.f32 %v594, %v598
    %v806 = vmax.f32 %v804, %v600
    %v807 = vmax.f32 %v805, %v602
    %v808 = vmax.f32 %v806, %v604
    %v809 = vmax.f32 %v807, %v606
    %v810 = vmax.f32 %v808, %v608
    %v811 = vmax.f32 %v809, %v610
    %v812 = vmax.f32 %v810, %v612
    %v813 = vmax.f32 %v811, %v614
    %v814 = vmax.f32 %v812, %v616
    %v815 = vmax.f32 %v813, %v618
    %v816 = vmax.f32 %v814, %v620
    %v817 = vmax.f32 %v815, %v622
    %v818 = vmax.f32 %v816, %v817
    %v819 = vrot.slane %v818, 4
    %v820 = vmax.f32 %v818, %v819
    %v821 = vrot.slane %v820, 2
    %v822 = vmax.f32 %v820, %v821
    %v823 = vrot.slane %v822, 1
    %v824 = vmax.f32 %v822, %v823
    %v825 = vsub.f32 %v560, %v803
    %v826 = vsub.f32 %v562, %v803
    %v827 = vsub.f32 %v564, %v803
    %v828 = vsub.f32 %v566, %v803
    %v829 = vsub.f32 %v568, %v803
    %v830 = vsub.f32 %v570, %v803
    %v831 = vsub.f32 %v572, %v803
    %v832 = vsub.f32 %v574, %v803
    %v833 = vsub.f32 %v576, %v803
    %v834 = vsub.f32 %v578, %v803
    %v835 = vsub.f32 %v580, %v803
    %v836 = vsub.f32 %v582, %v803
    %v837 = vsub.f32 %v584, %v803
    %v838 = vsub.f32 %v586, %v803
    %v839 = vsub.f32 %v588, %v803
    %v840 = vsub.f32 %v590, %v803
    %v841 = vsub.f32 %v592, %v824
    %v842 = vsub.f32 %v594, %v824
    %v843 = vsub.f32 %v596, %v824
    %v844 = vsub.f32 %v598, %v824
    %v845 = vsub.f32 %v600, %v824
    %v846 = vsub.f32 %v602, %v824
    %v847 = vsub.f32 %v604, %v824
    %v848 = vsub.f32 %v606, %v824
    %v849 = vsub.f32 %v608, %v824
    %v850 = vsub.f32 %v610, %v824
    %v851 = vsub.f32 %v612, %v824
    %v852 = vsub.f32 %v614, %v824
    %v853 = vsub.f32 %v616, %v824
    %v854 = vsub.f32 %v618, %v824
    %v855 = vsub.f32 %v620, %v824
    %v856 = vsub.f32 %v622, %v824
    %v857 = vmul.f32 %v825, 1.442695
    %v858 = vpow.pop %v857
    %v859 = vmul.f32 %v826, 1.442695
    %v860 = vpow.pop %v859
    %v861 = vmul.f32 %v827, 1.442695
    %v862 = vpow.pop %v861
    %v863 = vmul.f32 %v828, 1.442695
    %v864 = vpow.pop %v863
    %v865 = vmul.f32 %v829, 1.442695
    %v866 = vpow.pop %v865
    %v867 = vmul.f32 %v830, 1.442695
    %v868 = vpow.pop %v867
    %v869 = vmul.f32 %v831, 1.442695
    %v870 = vpow.pop %v869
    %v871 = vmul.f32 %v832, 1.442695
    %v872 = vpow.pop %v871
    %v873 = vmul.f32 %v833, 1.442695
    %v874 = vpow.pop %v873
    %v875 = vmul.f32 %v834, 1.442695
    %v876 = vpow.pop %v875
    %v877 = vmul.f32 %v835, 1.442695
    %v878 = vpow.pop %v877
    %v879 = vmul.f32 %v836, 1.442695
    %v880 = vpow.pop %v879
    %v881 = vmul.f32 %v837, 1.442695
    %v882 = vpow.pop %v881
    %v883 = vmul.f32 %v838, 1.442695
    %v884 = vpow.pop %v883
    %v885 = vmul.f32 %v839, 1.442695
    %v886 = vpow.pop %v885
    %v887 = vmul.f32 %v840, 1.442695
    %v888 = vpow.pop %v887
    %v889 = vmul.f32 %v841, 1.442695
    %v890 = vpow.pop %v889
    %v891 = vmul.f32 %v842, 1.442695
    %v892 = vpow.pop %v891
    %v893 = vmul.f32 %v843, 1.442695
    %v894 = vpow.pop %v893
    %v895 = vmul.f32 %v844, 1.442695
    %v896 = vpow.pop %v895
    %v897 = vmul.f32 %v845, 1.442695
    %v898 = vpow.pop %v897
    %v899 = vmul.f32 %v846, 1.442695
    %v900 = vpow.pop %v899
    %v901 = vmul.f32 %v847, 1.442695
    %v902 = vpow.pop %v901
    %v903 = vmul.f32 %v848, 1.442695
    %v904 = vpow.pop %v903
    %v905 = vmul.f32 %v849, 1.442695
    %v906 = vpow.pop %v905
    %v907 = vmul.f32 %v850, 1.442695
    %v908 = vpow.pop %v907
    %v909 = vmul.f32 %v851, 1.442695
    %v910 = vpow.pop %v909
    %v911 = vmul.f32 %v852, 1.442695
    %v912 = vpow.pop %v911
    %v913 = vmul.f32 %v853, 1.442695
    %v914 = vpow.pop %v913
    %v915 = vmul.f32 %v854, 1.442695
    %v916 = vpow.pop %v915
    %v917 = vmul.f32 %v855, 1.442695
    %v918 = vpow.pop %v917
    %v919 = vmul.f32 %v856, 1.442695
    %v920 = vpow.pop %v919
    %v921 = vmul.f32 %v656, %v858
    %v922 = vmul.f32 %v658, %v860
    %v923 = vmul.f32 %v660, %v862
    %v924 = vmul.f32 %v662, %v864
    %v925 = vmul.f32 %v664, %v866
    %v926 = vmul.f32 %v666, %v868
    %v927 = vmul.f32 %v668, %v870
    %v928 = vmul.f32 %v670, %v872
    %v929 = vmul.f32 %v672, %v874
    %v930 = vmul.f32 %v674, %v876
    %v931 = vmul.f32 %v676, %v878
    %v932 = vmul.f32 %v678, %v880
    %v933 = vmul.f32 %v680, %v882
    %v934 = vmul.f32 %v682, %v884
    %v935 = vmul.f32 %v684, %v886
    %v936 = vmul.f32 %v686, %v888
    %v937 = vmul.f32 %v688, %v890
    %v938 = vmul.f32 %v690, %v892
    %v939 = vmul.f32 %v692, %v894
    %v940 = vmul.f32 %v694, %v896
    %v941 = vmul.f32 %v696, %v898
    %v942 = vmul.f32 %v698, %v900
    %v943 = vmul.f32 %v700, %v902
    %v944 = vmul.f32 %v702, %v904
    %v945 = vmul.f32 %v704, %v906
    %v946 = vmul.f32 %v706, %v908
    %v947 = vmul.f32 %v708, %v910
    %v948 = vmul.f32 %v710, %v912
    %v949 = vmul.f32 %v712, %v914
    %v950 = vmul.f32 %v714, %v916
    %v951 = vmul.f32 %v716, %v918
    %v952 = vmul.f32 %v718, %v920
    %953 = vmatprep.subr.mxu0 0.0
    %954 = vmatpush1.msra.mxu0 %v936
    %955 = vmatprep.subr.mxu0 0.0
    %956 = vmatpush1.msra.mxu0 %v935
    %957 = vmatprep.subr.mxu0 0.0
    %958 = vmatpush1.msra.mxu0 %v934
    %959 = vmatprep.subr.mxu0 0.0
    %960 = vmatpush1.msra.mxu0 %v933
    %961 = vmatprep.subr.mxu0 0.0
    %962 = vmatpush1.msra.mxu0 %v932
    %963 = vmatprep.subr.mxu0 0.0
    %964 = vmatpush1.msra.mxu0 %v931
    %965 = vmatprep.subr.mxu0 0.0
    %966 = vmatpush1.msra.mxu0 %v930
    %967 = vmatprep.subr.mxu0 0.0
    %968 = vmatpush1.msra.mxu0 %v929
    %969 = vmatprep.subr.mxu0 0.0
    %970 = vmatpush1.msra.mxu0 %v928
    %971 = vmatprep.subr.mxu0 0.0
    %972 = vmatpush1.msra.mxu0 %v927
    %973 = vmatprep.subr.mxu0 0.0
    %974 = vmatpush1.msra.mxu0 %v926
    %975 = vmatprep.subr.mxu0 0.0
    %976 = vmatpush1.msra.mxu0 %v925
    %977 = vmatprep.subr.mxu0 0.0
    %978 = vmatpush1.msra.mxu0 %v924
    %979 = vmatprep.subr.mxu0 0.0
    %980 = vmatpush1.msra.mxu0 %v923
    %981 = vmatprep.subr.mxu0 0.0
    %982 = vmatpush1.msra.mxu0 %v922
    %983 = vmatprep.subr.mxu0 0.0
    %984 = vmatpush1.msra.mxu0 %v921
    %985 = vmatprep.subr.mxu0 0.0
    %986 = vmatpush2.msra.mxu0 0.0
    %987 = vmatprep.subr.mxu0 0.0
    %988 = vmatpush2.msra.mxu0 0.0
    %989 = vmatprep.subr.mxu0 0.0
    %990 = vmatpush2.msra.mxu0 0.0
    %991 = vmatprep.subr.mxu0 0.0
    %992 = vmatpush2.msra.mxu0 0.0
    %993 = vmatprep.subr.mxu0 0.0
    %994 = vmatpush2.msra.mxu0 0.0
    %995 = vmatprep.subr.mxu0 0.0
    %996 = vmatpush2.msra.mxu0 0.0
    %997 = vmatprep.subr.mxu0 0.0
    %998 = vmatpush2.msra.mxu0 0.0
    %999 = vmatprep.subr.mxu0 0.0
    %1000 = vmatpush2.msra.mxu0 0.0
    %1001 = vmatprep.subr.mxu0 0.0
    %1002 = vmatpush2.msra.mxu0 0.0
    %1003 = vmatprep.subr.mxu0 0.0
    %1004 = vmatpush2.msra.mxu0 0.0
    %1005 = vmatprep.subr.mxu0 0.0
    %1006 = vmatpush2.msra.mxu0 0.0
    %1007 = vmatprep.subr.mxu0 0.0
    %1008 = vmatpush2.msra.mxu0 0.0
    %1009 = vmatprep.subr.mxu0 0.0
    %1010 = vmatpush2.msra.mxu0 0.0
    %1011 = vmatprep.subr.mxu0 0.0
    %1012 = vmatpush2.msra.mxu0 0.0
    %1013 = vmatprep.subr.mxu0 0.0
    %1014 = vmatpush2.msra.mxu0 0.0
    %1015 = vmatprep.subr.mxu0 0.0
    %1016 = vmatpush2.msra.mxu0 0.0
    %1017 = vmatprep.mubr.f32.mxu0 0.0
    %1018 = vmatmul.mubr.f32.gmra.mxu0 1.0
    %v1019 = vpop.f32.mrf.mxu0
    %v1020 = vadd.f32 0.0, %v1019
    %v1021 = vpop.f32.mrf.mxu0
    %1022 = vdwg.mxu0
    %1023 = vmatprep.subr.mxu0 0.0
    %1024 = vmatpush1.msra.mxu0 %v952
    %1025 = vmatprep.subr.mxu0 0.0
    %1026 = vmatpush1.msra.mxu0 %v951
    %1027 = vmatprep.subr.mxu0 0.0
    %1028 = vmatpush1.msra.mxu0 %v950
    %1029 = vmatprep.subr.mxu0 0.0
    %1030 = vmatpush1.msra.mxu0 %v949
    %1031 = vmatprep.subr.mxu0 0.0
    %1032 = vmatpush1.msra.mxu0 %v948
    %1033 = vmatprep.subr.mxu0 0.0
    %1034 = vmatpush1.msra.mxu0 %v947
    %1035 = vmatprep.subr.mxu0 0.0
    %1036 = vmatpush1.msra.mxu0 %v946
    %1037 = vmatprep.subr.mxu0 0.0
    %1038 = vmatpush1.msra.mxu0 %v945
    %1039 = vmatprep.subr.mxu0 0.0
    %1040 = vmatpush1.msra.mxu0 %v944
    %1041 = vmatprep.subr.mxu0 0.0
    %1042 = vmatpush1.msra.mxu0 %v943
    %1043 = vmatprep.subr.mxu0 0.0
    %1044 = vmatpush1.msra.mxu0 %v942
    %1045 = vmatprep.subr.mxu0 0.0
    %1046 = vmatpush1.msra.mxu0 %v941
    %1047 = vmatprep.subr.mxu0 0.0
    %1048 = vmatpush1.msra.mxu0 %v940
    %1049 = vmatprep.subr.mxu0 0.0
    %1050 = vmatpush1.msra.mxu0 %v939
    %1051 = vmatprep.subr.mxu0 0.0
    %1052 = vmatpush1.msra.mxu0 %v938
    %1053 = vmatprep.subr.mxu0 0.0
    %1054 = vmatpush1.msra.mxu0 %v937
    %1055 = vmatprep.subr.mxu0 0.0
    %1056 = vmatpush2.msra.mxu0 0.0
    %1057 = vmatprep.subr.mxu0 0.0
    %1058 = vmatpush2.msra.mxu0 0.0
    %1059 = vmatprep.subr.mxu0 0.0
    %1060 = vmatpush2.msra.mxu0 0.0
    %1061 = vmatprep.subr.mxu0 0.0
    %1062 = vmatpush2.msra.mxu0 0.0
    %1063 = vmatprep.subr.mxu0 0.0
    %1064 = vmatpush2.msra.mxu0 0.0
    %1065 = vmatprep.subr.mxu0 0.0
    %1066 = vmatpush2.msra.mxu0 0.0
    %1067 = vmatprep.subr.mxu0 0.0
    %1068 = vmatpush2.msra.mxu0 0.0
    %1069 = vmatprep.subr.mxu0 0.0
    %1070 = vmatpush2.msra.mxu0 0.0
    %1071 = vmatprep.subr.mxu0 0.0
    %1072 = vmatpush2.msra.mxu0 0.0
    %1073 = vmatprep.subr.mxu0 0.0
    %1074 = vmatpush2.msra.mxu0 0.0
    %1075 = vmatprep.subr.mxu0 0.0
    %1076 = vmatpush2.msra.mxu0 0.0
    %1077 = vmatprep.subr.mxu0 0.0
    %1078 = vmatpush2.msra.mxu0 0.0
    %1079 = vmatprep.subr.mxu0 0.0
    %1080 = vmatpush2.msra.mxu0 0.0
    %1081 = vmatprep.subr.mxu0 0.0
    %1082 = vmatpush2.msra.mxu0 0.0
    %1083 = vmatprep.subr.mxu0 0.0
    %1084 = vmatpush2.msra.mxu0 0.0
    %1085 = vmatprep.subr.mxu0 0.0
    %1086 = vmatpush2.msra.mxu0 0.0
    %1087 = vmatprep.mubr.f32.mxu0 0.0
    %1088 = vmatmul.mubr.f32.gmra.mxu0 1.0
    %v1089 = vpop.f32.mrf.mxu0
    %v1090 = vadd.f32 0.0, %v1089
    %v1091 = vpop.f32.mrf.mxu0
    %1092 = vdwg.mxu0
    %v1093 = vrcp.pop %v720
    %v1094 = vrcp.pop %v722
    %v1095 = vrcp.pop %v724
    %v1096 = vrcp.pop %v726
    %v1097 = vrcp.pop %v728
    %v1098 = vrcp.pop %v730
    %v1099 = vrcp.pop %v732
    %v1100 = vrcp.pop %v734
    %v1101 = vrcp.pop %v736
    %v1102 = vrcp.pop %v738
    %v1103 = vrcp.pop %v740
    %v1104 = vrcp.pop %v742
    %v1105 = vrcp.pop %v744
    %v1106 = vrcp.pop %v746
    %v1107 = vrcp.pop %v748
    %v1108 = vrcp.pop %v750
    %v1109 = vrcp.pop %v752
    %v1110 = vrcp.pop %v754
    %v1111 = vrcp.pop %v756
    %v1112 = vrcp.pop %v758
    %v1113 = vrcp.pop %v760
    %v1114 = vrcp.pop %v762
    %v1115 = vrcp.pop %v764
    %v1116 = vrcp.pop %v766
    %v1117 = vrcp.pop %v768
    %v1118 = vrcp.pop %v770
    %v1119 = vrcp.pop %v772
    %v1120 = vrcp.pop %v774
    %v1121 = vrcp.pop %v776
    %v1122 = vrcp.pop %v778
    %v1123 = vrcp.pop %v780
    %v1124 = vrcp.pop %v782
    %v1125 = vrcp.pop %v1020
    %v1126 = vrcp.pop %v1090
    %v1127 = vmul.f32 %v656, %v1093
    %v1128 = vmul.f32 %v658, %v1094
    %v1129 = vmul.f32 %v660, %v1095
    %v1130 = vmul.f32 %v662, %v1096
    %v1131 = vmul.f32 %v664, %v1097
    %v1132 = vmul.f32 %v666, %v1098
    %v1133 = vmul.f32 %v668, %v1099
    %v1134 = vmul.f32 %v670, %v1100
    %v1135 = vmul.f32 %v672, %v1101
    %v1136 = vmul.f32 %v674, %v1102
    %v1137 = vmul.f32 %v676, %v1103
    %v1138 = vmul.f32 %v678, %v1104
    %v1139 = vmul.f32 %v680, %v1105
    %v1140 = vmul.f32 %v682, %v1106
    %v1141 = vmul.f32 %v684, %v1107
    %v1142 = vmul.f32 %v686, %v1108
    %v1143 = vmul.f32 %v688, %v1109
    %v1144 = vmul.f32 %v690, %v1110
    %v1145 = vmul.f32 %v692, %v1111
    %v1146 = vmul.f32 %v694, %v1112
    %v1147 = vmul.f32 %v696, %v1113
    %v1148 = vmul.f32 %v698, %v1114
    %v1149 = vmul.f32 %v700, %v1115
    %v1150 = vmul.f32 %v702, %v1116
    %v1151 = vmul.f32 %v704, %v1117
    %v1152 = vmul.f32 %v706, %v1118
    %v1153 = vmul.f32 %v708, %v1119
    %v1154 = vmul.f32 %v710, %v1120
    %v1155 = vmul.f32 %v712, %v1121
    %v1156 = vmul.f32 %v714, %v1122
    %v1157 = vmul.f32 %v716, %v1123
    %v1158 = vmul.f32 %v718, %v1124
    %v1159 = vlaneseq
    %v1160 = vshrl.u32 %v1159, 7
    %v1161 = vsub.s32 0, %v1160
    %v1162 = vrot.slane %v1125, %v1161
    %v1163 = vlaneseq
    %v1164 = vshrl.u32 %v1163, 7
    %v1165 = vsub.s32 0, %v1164
    %v1166 = vrot.slane %v1126, %v1165
    %v1167 = vmul.f32 %v921, %v1162
    %v1168 = vmul.f32 %v922, %v1162
    %v1169 = vmul.f32 %v923, %v1162
    %v1170 = vmul.f32 %v924, %v1162
    %v1171 = vmul.f32 %v925, %v1162
    %v1172 = vmul.f32 %v926, %v1162
    %v1173 = vmul.f32 %v927, %v1162
    %v1174 = vmul.f32 %v928, %v1162
    %v1175 = vmul.f32 %v929, %v1162
    %v1176 = vmul.f32 %v930, %v1162
    %v1177 = vmul.f32 %v931, %v1162
    %v1178 = vmul.f32 %v932, %v1162
    %v1179 = vmul.f32 %v933, %v1162
    %v1180 = vmul.f32 %v934, %v1162
    %v1181 = vmul.f32 %v935, %v1162
    %v1182 = vmul.f32 %v936, %v1162
    %v1183 = vmul.f32 %v937, %v1166
    %v1184 = vmul.f32 %v938, %v1166
    %v1185 = vmul.f32 %v939, %v1166
    %v1186 = vmul.f32 %v940, %v1166
    %v1187 = vmul.f32 %v941, %v1166
    %v1188 = vmul.f32 %v942, %v1166
    %v1189 = vmul.f32 %v943, %v1166
    %v1190 = vmul.f32 %v944, %v1166
    %v1191 = vmul.f32 %v945, %v1166
    %v1192 = vmul.f32 %v946, %v1166
    %v1193 = vmul.f32 %v947, %v1166
    %v1194 = vmul.f32 %v948, %v1166
    %v1195 = vmul.f32 %v949, %v1166
    %v1196 = vmul.f32 %v950, %v1166
    %v1197 = vmul.f32 %v951, %v1166
    %v1198 = vmul.f32 %v952, %v1166
    %v1199 = vmul.f32 %v1127, %v1167
    %v1200 = vmul.f32 %v1128, %v1168
    %v1201 = vmul.f32 %v1129, %v1169
    %v1202 = vmul.f32 %v1130, %v1170
    %v1203 = vmul.f32 %v1131, %v1171
    %v1204 = vmul.f32 %v1132, %v1172
    %v1205 = vmul.f32 %v1133, %v1173
    %v1206 = vmul.f32 %v1134, %v1174
    %v1207 = vmul.f32 %v1135, %v1175
    %v1208 = vmul.f32 %v1136, %v1176
    %v1209 = vmul.f32 %v1137, %v1177
    %v1210 = vmul.f32 %v1138, %v1178
    %v1211 = vmul.f32 %v1139, %v1179
    %v1212 = vmul.f32 %v1140, %v1180
    %v1213 = vmul.f32 %v1141, %v1181
    %v1214 = vmul.f32 %v1142, %v1182
    %v1215 = vmul.f32 %v1143, %v1183
    %v1216 = vmul.f32 %v1144, %v1184
    %v1217 = vmul.f32 %v1145, %v1185
    %v1218 = vmul.f32 %v1146, %v1186
    %v1219 = vmul.f32 %v1147, %v1187
    %v1220 = vmul.f32 %v1148, %v1188
    %v1221 = vmul.f32 %v1149, %v1189
    %v1222 = vmul.f32 %v1150, %v1190
    %v1223 = vmul.f32 %v1151, %v1191
    %v1224 = vmul.f32 %v1152, %v1192
    %v1225 = vmul.f32 %v1153, %v1193
    %v1226 = vmul.f32 %v1154, %v1194
    %v1227 = vmul.f32 %v1155, %v1195
    %v1228 = vmul.f32 %v1156, %v1196
    %v1229 = vmul.f32 %v1157, %v1197
    %v1230 = vmul.f32 %v1158, %v1198
    %1231 = vst [vmem:[#allocation2] sm:$0xff] %v1199
    %1232 = vst [vmem:[#allocation2 + $0x8] sm:$0xff] %v1200
    %1233 = vst [vmem:[#allocation2 + $0x10] sm:$0xff] %v1201
    %1234 = vst [vmem:[#allocation2 + $0x18] sm:$0xff] %v1202
    %1235 = vst [vmem:[#allocation2 + $0x20] sm:$0xff] %v1203
    %1236 = vst [vmem:[#allocation2 + $0x28] sm:$0xff] %v1204
    %1237 = vst [vmem:[#allocation2 + $0x30] sm:$0xff] %v1205
    %1238 = vst [vmem:[#allocation2 + $0x38] sm:$0xff] %v1206
    %1239 = vst [vmem:[#allocation2 + $0x40] sm:$0xff] %v1207
    %1240 = vst [vmem:[#allocation2 + $0x48] sm:$0xff] %v1208
    %1241 = vst [vmem:[#allocation2 + $0x50] sm:$0xff] %v1209
    %1242 = vst [vmem:[#allocation2 + $0x58] sm:$0xff] %v1210
    %1243 = vst [vmem:[#allocation2 + $0x60] sm:$0xff] %v1211
    %1244 = vst [vmem:[#allocation2 + $0x68] sm:$0xff] %v1212
    %1245 = vst [vmem:[#allocation2 + $0x70] sm:$0xff] %v1213
    %1246 = vst [vmem:[#allocation2 + $0x78] sm:$0xff] %v1214
    %1247 = vst [vmem:[#allocation2 + $0x80] sm:$0xff] %v1215
    %1248 = vst [vmem:[#allocation2 + $0x88] sm:$0xff] %v1216
    %1249 = vst [vmem:[#allocation2 + $0x90] sm:$0xff] %v1217
    %1250 = vst [vmem:[#allocation2 + $0x98] sm:$0xff] %v1218
    %1251 = vst [vmem:[#allocation2 + $0xa0] sm:$0xff] %v1219
    %1252 = vst [vmem:[#allocation2 + $0xa8] sm:$0xff] %v1220
    %1253 = vst [vmem:[#allocation2 + $0xb0] sm:$0xff] %v1221
    %1254 = vst [vmem:[#allocation2 + $0xb8] sm:$0xff] %v1222
    %1255 = vst [vmem:[#allocation2 + $0xc0] sm:$0xff] %v1223
    %1256 = vst [vmem:[#allocation2 + $0xc8] sm:$0xff] %v1224
    %1257 = vst [vmem:[#allocation2 + $0xd0] sm:$0xff] %v1225
    %1258 = vst [vmem:[#allocation2 + $0xd8] sm:$0xff] %v1226
    %1259 = vst [vmem:[#allocation2 + $0xe0] sm:$0xff] %v1227
    %1260 = vst [vmem:[#allocation2 + $0xe8] sm:$0xff] %v1228
    %1261 = vst [vmem:[#allocation2 + $0xf0] sm:$0xff] %v1229
    %1262 = vst [vmem:[#allocation2 + $0xf8] sm:$0xff] %v1230
    // Predicated region
    $region10: #{tpu_custom_call.1} parent=1 // pred_check
      _
    $region11: #{tpu_custom_call.1} parent=1 // pred_check_branch
      %1264 = sbr.rel (0) target = $region13
    $region12: #{tpu_custom_call.1} parent=1 // pred_region
      %s1266 = ssub.s32 4096, 4096
      %1267 = vsyncadd [#allocation3], %s1266
      %s1268 = sshll.u32 [#allocation2], 4
      %s1269 = int_to_ptr.vmem [resolvable:$true] %s1268
      %1274 = dma.vmem_to_hbm [thread:$0]  %s1269, 4096, %s2, [#allocation3], 128, 128, 8
    $region13: #{tpu_custom_call.1} parent=1 // pred_fallthru
      _
    // Predicated region
    $region14: #{tpu_custom_call.1} parent=1 // pred_check
      _
    $region15: #{tpu_custom_call.1} parent=1 // pred_check_branch
      %1276 = sbr.rel (0) target = $region17
    $region16: #{tpu_custom_call.1} parent=1 // pred_region
      %1277 = dma.done [#allocation3], 4096
    $region17: #{tpu_custom_call.1} parent=1 // pred_fallthru
      _
    %1278 = vsyncpa [#allocation3], 1

</llo_original>
